<compile_context>
chip_gen: v7x
topology: tpu7x:2x2x1
jax: 0.10.0
libtpu: 0.0.40
codegen_flags: <defaults>
</compile_context>

<pallas_src>
import functools

import jax
import jax.numpy as jnp
from jax import lax
from jax.experimental import pallas as pl
from jax.experimental.pallas import tpu as pltpu


def round_up(x, m):
    return ((x + m - 1) // m) * m


# ----------------------------- Pallas kernels --------------------------------
def conv_stats_kernel(p_ref, w_ref, y_ref, sum_ref, ssq_ref):
    """One M-tile: bf16 matmul (f32 acc) + per-channel sum / sumsq accumulation.

    p_ref:   [TM, CKp]  bf16 im2col patch tile (streamed)
    w_ref:   [CKp, Cp]  bf16 weight (resident across the grid)
    y_ref:   [TM, Cp]   f32 conv output tile (streamed out)
    sum_ref: [1, Cp]    f32 per-channel sum accumulator   (resident)
    ssq_ref: [1, Cp]    f32 per-channel sumsq accumulator (resident)
    """
    i = pl.program_id(0)

    y = jnp.dot(p_ref[...], w_ref[...], preferred_element_type=jnp.float32)
    y_ref[...] = y

    tile_sum = jnp.sum(y, axis=0, keepdims=True)
    tile_ssq = jnp.sum(y * y, axis=0, keepdims=True)

    @pl.when(i == 0)
    def _init():
        sum_ref[...] = tile_sum
        ssq_ref[...] = tile_ssq

    @pl.when(i > 0)
    def _accum():
        sum_ref[...] = sum_ref[...] + tile_sum
        ssq_ref[...] = ssq_ref[...] + tile_ssq


def bn_relu_kernel(y_ref, scale_ref, shift_ref, o_ref):
    """Apply y*scale + shift then ReLU.  scale/shift are [1, Cp] (resident)."""
    o_ref[...] = jnp.maximum(y_ref[...] * scale_ref[...] + shift_ref[...], 0.0)


# ----------------------------- pallas_call wrappers ---------------------------
def conv_stats(patches, w2d, tile_m):
    """patches: [Mp, CKp] bf16, w2d: [CKp, Cp] bf16 -> (y [Mp,Cp] f32, sum, ssq)."""
    m_pad, ck_pad = patches.shape
    c_pad = w2d.shape[1]
    n_tiles = m_pad // tile_m

    flops = 2 * m_pad * ck_pad * c_pad
    bytes_accessed = (patches.size * 2 + w2d.size * 2
                      + m_pad * c_pad * 4 + 2 * c_pad * 4)

    return pl.pallas_call(
        conv_stats_kernel,
        out_shape=(
            jax.ShapeDtypeStruct((m_pad, c_pad), jnp.float32),
            jax.ShapeDtypeStruct((1, c_pad), jnp.float32),
            jax.ShapeDtypeStruct((1, c_pad), jnp.float32),
        ),
        grid_spec=pltpu.PrefetchScalarGridSpec(
            num_scalar_prefetch=0,
            grid=(n_tiles,),
            in_specs=[
                pl.BlockSpec((tile_m, ck_pad), lambda i: (i, 0)),   # patch stream
                pl.BlockSpec((ck_pad, c_pad), lambda i: (0, 0)),    # resident weight
            ],
            out_specs=(
                pl.BlockSpec((tile_m, c_pad), lambda i: (i, 0)),    # y tiles
                pl.BlockSpec((1, c_pad), lambda i: (0, 0)),         # sum  (resident)
                pl.BlockSpec((1, c_pad), lambda i: (0, 0)),         # ssq  (resident)
            ),
        ),
        compiler_params=pltpu.CompilerParams(
            dimension_semantics=("arbitrary",)),    # stats accumulate sequentially
        cost_estimate=pl.CostEstimate(
            flops=flops, transcendentals=0, bytes_accessed=bytes_accessed),
    )(patches, w2d)


def bn_relu(y, scale, shift, tile_m):
    """y: [Mp, Cp] f32; scale/shift: [1, Cp] f32 -> [Mp, Cp] f32."""
    m_pad, c_pad = y.shape
    n_tiles = m_pad // tile_m

    return pl.pallas_call(
        bn_relu_kernel,
        out_shape=jax.ShapeDtypeStruct((m_pad, c_pad), jnp.float32),
        grid_spec=pltpu.PrefetchScalarGridSpec(
            num_scalar_prefetch=0,
            grid=(n_tiles,),
            in_specs=[
                pl.BlockSpec((tile_m, c_pad), lambda i: (i, 0)),
                pl.BlockSpec((1, c_pad), lambda i: (0, 0)),
                pl.BlockSpec((1, c_pad), lambda i: (0, 0)),
            ],
            out_specs=pl.BlockSpec((tile_m, c_pad), lambda i: (i, 0)),
        ),
        compiler_params=pltpu.CompilerParams(
            dimension_semantics=("parallel",)),     # independent tiles -> megacore
        cost_estimate=pl.CostEstimate(
            flops=3 * m_pad * c_pad, transcendentals=0,
            bytes_accessed=2 * m_pad * c_pad * 4 + 2 * c_pad * 4),
    )(y, scale, shift)


# ------------------------------- JAX glue ------------------------------------
def im2col_nhwc(x_nhwc, k, stride, padding):
    """Extract conv patches.  Returns ([N*Ho*Wo, k*k*C], (N, Ho, Wo))."""
    N, H, W, C = x_nhwc.shape
    xp = jnp.pad(x_nhwc, ((0, 0), (padding, padding), (padding, padding), (0, 0)))
    Ho = (H + 2 * padding - k) // stride + 1
    Wo = (W + 2 * padding - k) // stride + 1
    cols = []
    for kh in range(k):
        for kw in range(k):
            patch = xp[:, kh:kh + stride * Ho:stride, kw:kw + stride * Wo:stride, :]
            cols.append(patch)
    patches = jnp.concatenate(cols, axis=-1)  # [N, Ho, Wo, k*k*C], (kh, kw, c) order
    return patches.reshape(N * Ho * Wo, k * k * C), (N, Ho, Wo)


def torch_weight_to_im2col(w_oihw):
    """[Cout, Cin, Kh, Kw] -> [Kh*Kw*Cin, Cout], matching im2col (kh, kw, c) order."""
    Cout, Cin, Kh, Kw = w_oihw.shape
    return jnp.transpose(w_oihw, (2, 3, 1, 0)).reshape(Kh * Kw * Cin, Cout)


def conv_block(x_nhwc, w_oihw, gamma, beta, k, stride, padding,
               eps=1e-5, tile_m=256):
    """One ConvBlock: conv(bias=False) -> BN (training stats) -> ReLU, NHWC."""
    Cout = w_oihw.shape[0]

    # bf16 patch stream (halves the dominant HBM byte stream into the kernel).
    patches, (N, Ho, Wo) = im2col_nhwc(x_nhwc.astype(jnp.bfloat16), k, stride, padding)
    M, CK = patches.shape

    ck_pad = round_up(CK, 128)                 # lane-dense matmul K dim
    c_pad = round_up(Cout, 128)                # lane-dense output channels
    tm = min(tile_m, round_up(M, 16))
    m_pad = round_up(M, tm)

    patches_p = jnp.pad(patches, ((0, m_pad - M), (0, ck_pad - CK)))
    w2d = torch_weight_to_im2col(w_oihw).astype(jnp.bfloat16)
    w2d_p = jnp.pad(w2d, ((0, ck_pad - CK), (0, c_pad - Cout)))
    gamma_p = jnp.pad(gamma.astype(jnp.float32), (0, c_pad - Cout)).reshape(1, c_pad)
    beta_p = jnp.pad(beta.astype(jnp.float32), (0, c_pad - Cout)).reshape(1, c_pad)

    # Pass A: conv matmul + per-channel sum / sumsq over all rows.
    y, s, ss = conv_stats(patches_p, w2d_p, tm)

    # Finalize BN stats (biased variance over N*Ho*Wo true rows) -> scale/shift.
    count = jnp.float32(M)
    mean = s / count
    var = jnp.maximum(ss / count - mean * mean, 0.0)
    scale = gamma_p * lax.rsqrt(var + eps)
    shift = beta_p - mean * scale

    # Pass B: normalize + ReLU.
    out = bn_relu(y, scale, shift, tm)

    return out[:M, :Cout].reshape(N, Ho, Wo, Cout)


def double_base_conv(x_nchw, params, k, stride, padding):
    """Forward of DoubleBaseConv.  x_nchw: [N, Cin, H, W] -> [N, Cout, Ho, Wo]."""
    x = jnp.transpose(x_nchw, (0, 2, 3, 1))  # NCHW -> NHWC
    x = conv_block(x, params["w1"], params["g1"], params["b1"], k, stride, padding)
    x = conv_block(x, params["w2"], params["g2"], params["b2"], k, stride, padding)
    return jnp.transpose(x, (0, 3, 1, 2))  # NHWC -> NCHW


# -------------------------- pure-JAX reference --------------------------------
def reference_double_base_conv(x_nchw, params, k, stride, padding, eps=1e-5):
    def block(x, w, g, b):
        y = lax.conv_general_dilated(
            x, w, window_strides=(stride, stride),
            padding=[(padding, padding), (padding, padding)],
            dimension_numbers=("NCHW", "OIHW", "NCHW"))
        mean = jnp.mean(y, axis=(0, 2, 3), keepdims=True)
        var = jnp.mean((y - mean) ** 2, axis=(0, 2, 3), keepdims=True)
        y = (y - mean) * lax.rsqrt(var + eps)
        y = g.reshape(1, -1, 1, 1) * y + b.reshape(1, -1, 1, 1)
        return jnp.maximum(y, 0.0)

    x = block(x_nchw, params["w1"], params["g1"], params["b1"])
    x = block(x, params["w2"], params["g2"], params["b2"])
    return x


# ---------------------------------- main --------------------------------------
if __name__ == "__main__":
    # DoubleBaseConv(in_channels=4, out_channels=8, kernel_size=3, stride=1, padding=1)
    in_ch, out_ch, K, STRIDE, PAD = 4, 8, 3, 1, 1
    N, H, W = 2, 16, 16

    key = jax.random.PRNGKey(0)
    kx, kw1, kw2, kg1, kb1, kg2, kb2 = jax.random.split(key, 7)

    x = jax.random.normal(kx, (N, in_ch, H, W), dtype=jnp.float32)

    fan_in1 = in_ch * K * K
    fan_in2 = out_ch * K * K
    params = {
        "w1": jax.random.normal(kw1, (out_ch, in_ch, K, K), jnp.float32) * (2.0 / fan_in1) ** 0.5,
        "w2": jax.random.normal(kw2, (out_ch, out_ch, K, K), jnp.float32) * (2.0 / fan_in2) ** 0.5,
        "g1": 1.0 + 0.1 * jax.random.normal(kg1, (out_ch,), jnp.float32),
        "b1": 0.1 * jax.random.normal(kb1, (out_ch,), jnp.float32),
        "g2": 1.0 + 0.1 * jax.random.normal(kg2, (out_ch,), jnp.float32),
        "b2": 0.1 * jax.random.normal(kb2, (out_ch,), jnp.float32),
    }

    fwd = jax.jit(functools.partial(double_base_conv, k=K, stride=STRIDE, padding=PAD))
    out = jax.block_until_ready(fwd(x, params))

    ref = reference_double_base_conv(x, params, K, STRIDE, PAD)
    assert out.shape == (N, out_ch, H, W), out.shape
    # bf16 MXU operands (f32 accumulation / BN) vs an all-f32 reference:
    # tolerance is set to bf16-level precision on unit-scale post-BN outputs.
    max_err = float(jnp.max(jnp.abs(out - ref)))
    assert jnp.allclose(out, ref, atol=5e-2, rtol=5e-2), max_err

    print("KERNEL_OK")
</pallas_src>

<mosaic_0001>
module attributes {stable_mosaic.version = 11 : i64} {
  func.func @conv_stats_kernel(%arg0: i32, %arg1: memref<256x128xbf16, #tpu.memory_space<vmem>>, %arg2: memref<128x128xbf16, #tpu.memory_space<vmem>>, %arg3: memref<256x128xf32, #tpu.memory_space<vmem>>, %arg4: memref<1x128xf32, #tpu.memory_space<vmem>>, %arg5: memref<1x128xf32, #tpu.memory_space<vmem>>) attributes {dimension_semantics = [#tpu.dimension_semantics<arbitrary>], iteration_bounds = array<i64: 2>, scalar_prefetch = 0 : i64, scratch_operands = 0 : i64, tpu.core_type = #tpu.core_type<tc>, window_params = [{transform_indices = @transform_0, window_bounds = array<i64: 256, 128>}, {pipeline_mode = #tpu.pipeline_mode<synchronous>, transform_indices = @transform_1, window_bounds = array<i64: 128, 128>}, {transform_indices = @transform_2, window_bounds = array<i64: 256, 128>}, {pipeline_mode = #tpu.pipeline_mode<synchronous>, transform_indices = @transform_3, window_bounds = array<i64: 1, 128>}, {pipeline_mode = #tpu.pipeline_mode<synchronous>, transform_indices = @transform_4, window_bounds = array<i64: 1, 128>}]} {
    %c0 = arith.constant 0 : index
    %c0_0 = arith.constant 0 : index
    %0 = vector.load %arg1[%c0, %c0_0] : memref<256x128xbf16, #tpu.memory_space<vmem>>, vector<256x128xbf16>
    %c0_1 = arith.constant 0 : index
    %c0_2 = arith.constant 0 : index
    %1 = vector.load %arg2[%c0_1, %c0_2] : memref<128x128xbf16, #tpu.memory_space<vmem>>, vector<128x128xbf16>
    %cst = arith.constant dense<0.000000e+00> : vector<256x128xf32>
    %2 = tpu.matmul %0, %1, %cst {dimension_numbers = #tpu.dot_dimension_numbers<[1], [0], [0], [1], [0, 0, 1, 1], [], []>} : vector<256x128xbf16>, vector<128x128xbf16>, vector<256x128xf32> -> vector<256x128xf32>
    %c0_3 = arith.constant 0 : index
    %c0_4 = arith.constant 0 : index
    %3 = vector.load %arg3[%c0_3, %c0_4] : memref<256x128xf32, #tpu.memory_space<vmem>>, vector<256x128xf32>
    tpu.vector_store %arg3[%c0_3, %c0_4], %2 {strides = array<i32>} : memref<256x128xf32, #tpu.memory_space<vmem>>, vector<256x128xf32>,
    %cst_5 = arith.constant dense<0.000000e+00> : vector<128xf32>
    %4 = vector.multi_reduction <add>, %2, %cst_5 [0] : vector<256x128xf32> to vector<128xf32>
    %5 = vector.shape_cast %4 : vector<128xf32> to vector<1x128xf32>
    %6 = arith.mulf %2, %2 : vector<256x128xf32>
    %cst_6 = arith.constant dense<0.000000e+00> : vector<128xf32>
    %7 = vector.multi_reduction <add>, %6, %cst_6 [0] : vector<256x128xf32> to vector<128xf32>
    %8 = vector.shape_cast %7 : vector<128xf32> to vector<1x128xf32>
    %c0_i32 = arith.constant 0 : i32
    %9 = arith.cmpi eq, %arg0, %c0_i32 : i32
    %10 = arith.extui %9 : i1 to i32
    %c0_i32_7 = arith.constant 0 : i32
    %11 = arith.cmpi ne, %10, %c0_i32_7 : i32
    scf.if %11 {
      %c0_10 = arith.constant 0 : index
      %c0_11 = arith.constant 0 : index
      %15 = vector.load %arg4[%c0_10, %c0_11] : memref<1x128xf32, #tpu.memory_space<vmem>>, vector<1x128xf32>
      tpu.vector_store %arg4[%c0_10, %c0_11], %5 {strides = array<i32>} : memref<1x128xf32, #tpu.memory_space<vmem>>, vector<1x128xf32>,
      %c0_12 = arith.constant 0 : index
      %c0_13 = arith.constant 0 : index
      %16 = vector.load %arg5[%c0_12, %c0_13] : memref<1x128xf32, #tpu.memory_space<vmem>>, vector<1x128xf32>
      tpu.vector_store %arg5[%c0_12, %c0_13], %8 {strides = array<i32>} : memref<1x128xf32, #tpu.memory_space<vmem>>, vector<1x128xf32>,
    } else {
    }
    %c0_i32_8 = arith.constant 0 : i32
    %12 = arith.cmpi sgt, %arg0, %c0_i32_8 : i32
    %13 = arith.extui %12 : i1 to i32
    %c0_i32_9 = arith.constant 0 : i32
    %14 = arith.cmpi ne, %13, %c0_i32_9 : i32
    scf.if %14 {
      %c0_10 = arith.constant 0 : index
      %c0_11 = arith.constant 0 : index
      %15 = vector.load %arg4[%c0_10, %c0_11] : memref<1x128xf32, #tpu.memory_space<vmem>>, vector<1x128xf32>
      %16 = arith.addf %15, %5 : vector<1x128xf32>
      %c0_12 = arith.constant 0 : index
      %c0_13 = arith.constant 0 : index
      %17 = vector.load %arg4[%c0_12, %c0_13] : memref<1x128xf32, #tpu.memory_space<vmem>>, vector<1x128xf32>
      tpu.vector_store %arg4[%c0_12, %c0_13], %16 {strides = array<i32>} : memref<1x128xf32, #tpu.memory_space<vmem>>, vector<1x128xf32>,
      %c0_14 = arith.constant 0 : index
      %c0_15 = arith.constant 0 : index
      %18 = vector.load %arg5[%c0_14, %c0_15] : memref<1x128xf32, #tpu.memory_space<vmem>>, vector<1x128xf32>
      %19 = arith.addf %18, %8 : vector<1x128xf32>
      %c0_16 = arith.constant 0 : index
      %c0_17 = arith.constant 0 : index
      %20 = vector.load %arg5[%c0_16, %c0_17] : memref<1x128xf32, #tpu.memory_space<vmem>>, vector<1x128xf32>
      tpu.vector_store %arg5[%c0_16, %c0_17], %19 {strides = array<i32>} : memref<1x128xf32, #tpu.memory_space<vmem>>, vector<1x128xf32>,
    } else {
    }
    return
  }
  func.func @transform_0(%arg0: i32) -> (i32, i32) {
    %c0_i32 = arith.constant 0 : i32
    %c0_i32_0 = arith.constant 0 : i32
    return %arg0, %c0_i32 : i32, i32
  }
  func.func @transform_1(%arg0: i32) -> (i32, i32) {
    %c0_i32 = arith.constant 0 : i32
    %c0_i32_0 = arith.constant 0 : i32
    %c0_i32_1 = arith.constant 0 : i32
    return %c0_i32, %c0_i32_0 : i32, i32
  }
  func.func @transform_2(%arg0: i32) -> (i32, i32) {
    %c0_i32 = arith.constant 0 : i32
    %c0_i32_0 = arith.constant 0 : i32
    return %arg0, %c0_i32 : i32, i32
  }
  func.func @transform_3(%arg0: i32) -> (i32, i32) {
    %c0_i32 = arith.constant 0 : i32
    %c0_i32_0 = arith.constant 0 : i32
    %c0_i32_1 = arith.constant 0 : i32
    return %c0_i32, %c0_i32_0 : i32, i32
  }
  func.func @transform_4(%arg0: i32) -> (i32, i32) {
    %c0_i32 = arith.constant 0 : i32
    %c0_i32_0 = arith.constant 0 : i32
    %c0_i32_1 = arith.constant 0 : i32
    return %c0_i32, %c0_i32_0 : i32, i32
  }
}

module attributes {stable_mosaic.version = 11 : i64} {
  func.func @bn_relu_kernel(%arg0: i32, %arg1: memref<256x128xf32, #tpu.memory_space<vmem>>, %arg2: memref<1x128xf32, #tpu.memory_space<vmem>>, %arg3: memref<1x128xf32, #tpu.memory_space<vmem>>, %arg4: memref<256x128xf32, #tpu.memory_space<vmem>>) attributes {dimension_semantics = [#tpu.dimension_semantics<parallel>], iteration_bounds = array<i64: 2>, scalar_prefetch = 0 : i64, scratch_operands = 0 : i64, tpu.core_type = #tpu.core_type<tc>, window_params = [{transform_indices = @transform_0, window_bounds = array<i64: 256, 128>}, {pipeline_mode = #tpu.pipeline_mode<synchronous>, transform_indices = @transform_1, window_bounds = array<i64: 1, 128>}, {pipeline_mode = #tpu.pipeline_mode<synchronous>, transform_indices = @transform_2, window_bounds = array<i64: 1, 128>}, {transform_indices = @transform_3, window_bounds = array<i64: 256, 128>}]} {
    %c0 = arith.constant 0 : index
    %c0_0 = arith.constant 0 : index
    %0 = vector.load %arg1[%c0, %c0_0] : memref<256x128xf32, #tpu.memory_space<vmem>>, vector<256x128xf32>
    %c0_1 = arith.constant 0 : index
    %c0_2 = arith.constant 0 : index
    %1 = vector.load %arg2[%c0_1, %c0_2] : memref<1x128xf32, #tpu.memory_space<vmem>>, vector<1x128xf32>
    %2 = vector.broadcast %1 : vector<1x128xf32> to vector<256x128xf32>
    %3 = arith.mulf %0, %2 : vector<256x128xf32>
    %c0_3 = arith.constant 0 : index
    %c0_4 = arith.constant 0 : index
    %4 = vector.load %arg3[%c0_3, %c0_4] : memref<1x128xf32, #tpu.memory_space<vmem>>, vector<1x128xf32>
    %5 = vector.broadcast %4 : vector<1x128xf32> to vector<256x128xf32>
    %6 = arith.addf %3, %5 : vector<256x128xf32>
    %cst = arith.constant 0.000000e+00 : f32
    %7 = vector.broadcast %cst : f32 to vector<256x128xf32>
    %8 = arith.maximumf %6, %7 : vector<256x128xf32>
    %c0_5 = arith.constant 0 : index
    %c0_6 = arith.constant 0 : index
    %9 = vector.load %arg4[%c0_5, %c0_6] : memref<256x128xf32, #tpu.memory_space<vmem>>, vector<256x128xf32>
    tpu.vector_store %arg4[%c0_5, %c0_6], %8 {strides = array<i32>} : memref<256x128xf32, #tpu.memory_space<vmem>>, vector<256x128xf32>,
    return
  }
  func.func @transform_0(%arg0: i32) -> (i32, i32) {
    %c0_i32 = arith.constant 0 : i32
    %c0_i32_0 = arith.constant 0 : i32
    return %arg0, %c0_i32 : i32, i32
  }
  func.func @transform_1(%arg0: i32) -> (i32, i32) {
    %c0_i32 = arith.constant 0 : i32
    %c0_i32_0 = arith.constant 0 : i32
    %c0_i32_1 = arith.constant 0 : i32
    return %c0_i32, %c0_i32_0 : i32, i32
  }
  func.func @transform_2(%arg0: i32) -> (i32, i32) {
    %c0_i32 = arith.constant 0 : i32
    %c0_i32_0 = arith.constant 0 : i32
    %c0_i32_1 = arith.constant 0 : i32
    return %c0_i32, %c0_i32_0 : i32, i32
  }
  func.func @transform_3(%arg0: i32) -> (i32, i32) {
    %c0_i32 = arith.constant 0 : i32
    %c0_i32_0 = arith.constant 0 : i32
    return %arg0, %c0_i32 : i32, i32
  }
}

</mosaic_0001>

<llo_original>
// kernel: double_base_conv.5
$region0: #{double_base_conv.5}
  #allocation0 [shape = 'u32[]', space=smem, size = 0x4, offset = 0x4, fixed_abs, tag = 'smem constant byte address 0x4 - core index']
  #allocation1 [shape = 'u32[144,128]{1,0:T(1,128)}', space=vmem, size = 0x12000, scoped, tag = 'internal scratch']
  %s0 = inlined_call_operand.vmem [shape: f32[512,128], index: 0, kind: input, shape index: {}]
  %s1 = inlined_call_operand.vmem [shape: f32[1,128], index: 1, kind: input, shape index: {}]
  %s2 = inlined_call_operand.vmem [shape: f32[1,128], index: 2, kind: input, shape index: {}]
  %s3 = inlined_call_operand.vmem [shape: f32[512,128], index: 3, kind: output, shape index: {}]
  %s4 = sld [smem:[#allocation0]]
  $region45: #{double_base_conv.5} parent=0
    _
  %s6 = ssub.s32 1, %s4
  %s7 = scalar_select 0, %s6, %s4
  loop: start=0, step=1, limit=4
  $region2: #{double_base_conv.5} parent=0 // loop_pre_header
    _
  $region3: #{double_base_conv.5} parent=0 // loop_header
    %s9 = sphi 0, %s13
    %p10 = scmp.ge.s32.totalorder %s9, 4
    %s19 = sphi 0, %s21
    %s22 = sphi 0, %s19
    %s23 = sphi 0, %s22
    %s39 = sphi 0, %s23
    %s43 = sphi 0, %s43
    %s45 = sphi 0, %s43
    %s46 = sphi 0, %s45
    %s60 = sphi 0, %s46
    %s64 = sphi 0, %s64
    %s66 = sphi 0, %s64
    %s67 = sphi 0, %s66
    %s81 = sphi 0, %s67
    %s87 = sphi 0, %s89
    %s90 = sphi 0, %s87
    %s91 = sphi 0, %s90
    %s107 = sphi 0, %s91
  $region4: #{double_base_conv.5} parent=0 // loop_header_branch
    %12 = sbr.rel (%p10) target = $region8
  $region5: #{double_base_conv.5} parent=0 // loop_body
    %s14 = ssub.s32 %s9, 1
    %s15 = ssub.s32 %s9, 2
    %s16 = sadd.s32 %s9, 1
    %s17 = ssub.s32 %s9, %s16
    %p18 = scmp.eq.s32.totalorder %s17, 0
    %s20 = sadd.s32 %s19, 1
    %s21 = scalar_select %p18, %s19, %s20
    %p24 = pneg %p18
    %p25 = scmp.eq.s32.totalorder %s9, 1
    %p26 = por %p24, %p25
    %p27 = scmp.ne.s32.totalorder %s19, %s22
    %p28 = scmp.eq.s32.totalorder %s9, 0
    %p29 = por %p27, %p28
    %p30 = scmp.ne.s32.totalorder %s19, %s22
    %p31 = scmp.eq.s32.totalorder %s14, 1
    %p32 = por %p30, %p31
    %p33 = scmp.ne.s32.totalorder %s22, %s23
    %p34 = scmp.eq.s32.totalorder %s14, 0
    %p35 = por %p33, %p34
    %p36 = scmp.ne.s32.totalorder %s22, %s23
    %p37 = scmp.eq.s32.totalorder %s15, 1
    %p38 = por %p36, %p37
    %p40 = scmp.ne.s32.totalorder %s23, %s39
    %p41 = scmp.eq.s32.totalorder %s15, 0
    %p42 = por %p40, %p41
    %s44 = sadd.s32 %s43, 1
    %p47 = scmp.eq.s32.totalorder %s9, 1
    %p48 = scmp.ne.s32.totalorder %s43, %s45
    %p49 = scmp.eq.s32.totalorder %s9, 0
    %p50 = por %p48, %p49
    %p51 = scmp.ne.s32.totalorder %s43, %s45
    %p52 = scmp.eq.s32.totalorder %s14, 1
    %p53 = por %p51, %p52
    %p54 = scmp.ne.s32.totalorder %s45, %s46
    %p55 = scmp.eq.s32.totalorder %s14, 0
    %p56 = por %p54, %p55
    %p57 = scmp.ne.s32.totalorder %s45, %s46
    %p58 = scmp.eq.s32.totalorder %s15, 1
    %p59 = por %p57, %p58
    %p61 = scmp.ne.s32.totalorder %s46, %s60
    %p62 = scmp.eq.s32.totalorder %s15, 0
    %p63 = por %p61, %p62
    %s65 = sadd.s32 %s64, 1
    %p68 = scmp.eq.s32.totalorder %s9, 1
    %p69 = scmp.ne.s32.totalorder %s64, %s66
    %p70 = scmp.eq.s32.totalorder %s9, 0
    %p71 = por %p69, %p70
    %p72 = scmp.ne.s32.totalorder %s64, %s66
    %p73 = scmp.eq.s32.totalorder %s14, 1
    %p74 = por %p72, %p73
    %p75 = scmp.ne.s32.totalorder %s66, %s67
    %p76 = scmp.eq.s32.totalorder %s14, 0
    %p77 = por %p75, %p76
    %p78 = scmp.ne.s32.totalorder %s66, %s67
    %p79 = scmp.eq.s32.totalorder %s15, 1
    %p80 = por %p78, %p79
    %p82 = scmp.ne.s32.totalorder %s67, %s81
    %p83 = scmp.eq.s32.totalorder %s15, 0
    %p84 = por %p82, %p83
    %s85 = ssub.s32 %s9, %s16
    %p86 = scmp.eq.s32.totalorder %s85, 0
    %s88 = sadd.s32 %s87, 1
    %s89 = scalar_select %p86, %s87, %s88
    %p92 = pneg %p86
    %p93 = scmp.eq.s32.totalorder %s9, 1
    %p94 = por %p92, %p93
    %p95 = scmp.ne.s32.totalorder %s87, %s90
    %p96 = scmp.eq.s32.totalorder %s9, 0
    %p97 = por %p95, %p96
    %p98 = scmp.ne.s32.totalorder %s87, %s90
    %p99 = scmp.eq.s32.totalorder %s14, 1
    %p100 = por %p98, %p99
    %p101 = scmp.ne.s32.totalorder %s90, %s91
    %p102 = scmp.eq.s32.totalorder %s14, 0
    %p103 = por %p101, %p102
    %p104 = scmp.ne.s32.totalorder %s90, %s91
    %p105 = scmp.eq.s32.totalorder %s15, 1
    %p106 = por %p104, %p105
    %p108 = scmp.ne.s32.totalorder %s91, %s107
    %p109 = scmp.eq.s32.totalorder %s15, 0
    %p110 = por %p108, %p109
    %p111 = scmp.le.s32.totalorder 1, %s9
    %p112 = scmp.lt.s32.totalorder %s9, 3
    %p113 = pnand %p111, %p112
    %p114 = pneg %p113
    // Predicated region
    $region9: #{double_base_conv.5} parent=5 // pred_check
      _
    $region10: #{double_base_conv.5} parent=5 // pred_check_branch
      %116 = sbr.rel (%p113) target = $region12
    $region11: #{double_base_conv.5} parent=5 // pred_region
      %s117 = ssub.s32 %s9, 1
      // Predicated region
      $region13: #{double_base_conv.5} parent=11 // pred_check
        %p118 = pneg %p56
      $region14: #{double_base_conv.5} parent=11 // pred_check_branch
        %120 = sbr.rel (%p118) target = $region16
      $region15: #{double_base_conv.5} parent=11 // pred_region
        _
      $region16: #{double_base_conv.5} parent=11 // pred_fallthru
        _
      // Predicated region
      $region17: #{double_base_conv.5} parent=11 // pred_check
        %p121 = pneg %p77
      $region18: #{double_base_conv.5} parent=11 // pred_check_branch
        %123 = sbr.rel (%p121) target = $region20
      $region19: #{double_base_conv.5} parent=11 // pred_region
        _
      $region20: #{double_base_conv.5} parent=11 // pred_fallthru
        _
    $region12: #{double_base_conv.5} parent=5 // pred_fallthru
      _
    %p124 = scmp.lt.s32.totalorder %s9, 2
    // Predicated region
    $region21: #{double_base_conv.5} parent=5 // pred_check
      %p125 = pneg %p124
    $region22: #{double_base_conv.5} parent=5 // pred_check_branch
      %127 = sbr.rel (%p125) target = $region24
    $region23: #{double_base_conv.5} parent=5 // pred_region
      // Predicated region
      $region25: #{double_base_conv.5} parent=23 // pred_check
        %p128 = pneg %p29
      $region26: #{double_base_conv.5} parent=23 // pred_check_branch
        %130 = sbr.rel (%p128) target = $region28
      $region27: #{double_base_conv.5} parent=23 // pred_region
        %s131 = smul.u32 32, %s9
        %p132 = scmp.lt.s32.totalorder %s131, 63
        %s133 = scalar_select %p132, %s131, 63
        %s134 = smul.addr %s133, 8
        %s135 = scalar_lea.vmem %s0, %s134
        %s136 = smul.u32 32, %s9
      $region28: #{double_base_conv.5} parent=23 // pred_fallthru
        _
    $region24: #{double_base_conv.5} parent=5 // pred_fallthru
      _
    %p137 = scmp.le.s32.totalorder 1, %s9
    %p138 = scmp.lt.s32.totalorder %s9, 3
    %p139 = pnand %p137, %p138
    %p140 = pneg %p139
    // Predicated region
    $region29: #{double_base_conv.5} parent=5 // pred_check
      _
    $region30: #{double_base_conv.5} parent=5 // pred_check_branch
      %142 = sbr.rel (%p139) target = $region32
    $region31: #{double_base_conv.5} parent=5 // pred_region
      %s143 = ssub.s32 %s9, 1
      %s144 = smul.u32 32, %s14
      %p145 = scmp.lt.s32.totalorder %s144, 63
      %s146 = scalar_select %p145, %s144, 63
      %s147 = smul.addr %s146, 8
      %s148 = scalar_lea.vmem %s0, %s147
      %p149 = pneg %p35
      %p150 = pneg %p32
      %p151 = pneg %p56
      %p152 = pneg %p53
      %p153 = pneg %p77
      %p154 = pneg %p74
      %p155 = pneg %p103
      %p156 = pneg %p100
      %s157 = smul.u32 32, %s14
      %p158 = scmp.lt.s32.totalorder %s157, 63
      %s159 = scalar_select %p158, %s157, 63
      %s160 = smul.addr %s159, 8
      %s161 = scalar_lea.vmem %s3, %s160
      %s162 = smul.u32 32, %s14
      %p163 = scmp.lt.s32.totalorder %s162, 63
      %s164 = scalar_select %p163, %s162, 63
      %s165 = smul.addr %s164, 8
      %s166 = scalar_lea.vmem %s0, %s165
      %s167 = smul.u32 32, %s14
      %s168 = smul.u32 32, %s14
      %p169 = scmp.lt.s32.totalorder %s168, 63
      %s170 = scalar_select %p169, %s168, 63
      %s171 = smul.addr %s170, 8
      %s172 = scalar_lea.vmem %s3, %s171
      %s173 = smul.u32 32, %s14
      %v174 = vld [vmem:[%s166] sm:$0xff]
      %v175 = vld [vmem:[%s166 + $0x8] sm:$0xff]
      %v176 = vld [vmem:[%s166 + $0x10] sm:$0xff]
      %v177 = vld [vmem:[%s166 + $0x18] sm:$0xff]
      %v178 = vld [vmem:[%s166 + $0x20] sm:$0xff]
      %v179 = vld [vmem:[%s166 + $0x28] sm:$0xff]
      %v180 = vld [vmem:[%s166 + $0x30] sm:$0xff]
      %v181 = vld [vmem:[%s166 + $0x38] sm:$0xff]
      %v182 = vld [vmem:[%s166 + $0x40] sm:$0xff]
      %v183 = vld [vmem:[%s166 + $0x48] sm:$0xff]
      %v184 = vld [vmem:[%s166 + $0x50] sm:$0xff]
      %v185 = vld [vmem:[%s166 + $0x58] sm:$0xff]
      %v186 = vld [vmem:[%s166 + $0x60] sm:$0xff]
      %v187 = vld [vmem:[%s166 + $0x68] sm:$0xff]
      %v188 = vld [vmem:[%s166 + $0x70] sm:$0xff]
      %v189 = vld [vmem:[%s166 + $0x78] sm:$0xff]
      %v190 = vld [vmem:[%s166 + $0x80] sm:$0xff]
      %v191 = vld [vmem:[%s166 + $0x88] sm:$0xff]
      %v192 = vld [vmem:[%s166 + $0x90] sm:$0xff]
      %v193 = vld [vmem:[%s166 + $0x98] sm:$0xff]
      %v194 = vld [vmem:[%s166 + $0xa0] sm:$0xff]
      %v195 = vld [vmem:[%s166 + $0xa8] sm:$0xff]
      %v196 = vld [vmem:[%s166 + $0xb0] sm:$0xff]
      %v197 = vld [vmem:[%s166 + $0xb8] sm:$0xff]
      %v198 = vld [vmem:[%s166 + $0xc0] sm:$0xff]
      %v199 = vld [vmem:[%s166 + $0xc8] sm:$0xff]
      %v200 = vld [vmem:[%s166 + $0xd0] sm:$0xff]
      %v201 = vld [vmem:[%s166 + $0xd8] sm:$0xff]
      %v202 = vld [vmem:[%s166 + $0xe0] sm:$0xff]
      %v203 = vld [vmem:[%s166 + $0xe8] sm:$0xff]
      %v204 = vld [vmem:[%s166 + $0xf0] sm:$0xff]
      %v205 = vld [vmem:[%s166 + $0xf8] sm:$0xff]
      %v206 = vld [vmem:[%s1] sm:$0x1]
      %v208 = vlaneseq
      %v209 = vshrl.u32 %v208, 7
      %v210 = vsub.s32 0, %v209
      %v211 = vrot.slane %v206, %v210
      %v213 = vmul.f32 %v174, %v211
      %v214 = vmul.f32 %v175, %v211
      %v215 = vmul.f32 %v176, %v211
      %v216 = vmul.f32 %v177, %v211
      %v217 = vmul.f32 %v178, %v211
      %v218 = vmul.f32 %v179, %v211
      %v219 = vmul.f32 %v180, %v211
      %v220 = vmul.f32 %v181, %v211
      %v221 = vmul.f32 %v182, %v211
      %v222 = vmul.f32 %v183, %v211
      %v223 = vmul.f32 %v184, %v211
      %v224 = vmul.f32 %v185, %v211
      %v225 = vmul.f32 %v186, %v211
      %v226 = vmul.f32 %v187, %v211
      %v227 = vmul.f32 %v188, %v211
      %v228 = vmul.f32 %v189, %v211
      %v229 = vmul.f32 %v190, %v211
      %v230 = vmul.f32 %v191, %v211
      %v231 = vmul.f32 %v192, %v211
      %v232 = vmul.f32 %v193, %v211
      %v233 = vmul.f32 %v194, %v211
      %v234 = vmul.f32 %v195, %v211
      %v235 = vmul.f32 %v196, %v211
      %v236 = vmul.f32 %v197, %v211
      %v237 = vmul.f32 %v198, %v211
      %v238 = vmul.f32 %v199, %v211
      %v239 = vmul.f32 %v200, %v211
      %v240 = vmul.f32 %v201, %v211
      %v241 = vmul.f32 %v202, %v211
      %v242 = vmul.f32 %v203, %v211
      %v243 = vmul.f32 %v204, %v211
      %v244 = vmul.f32 %v205, %v211
      %v245 = vld [vmem:[%s2] sm:$0x1]
      %v247 = vlaneseq
      %v248 = vshrl.u32 %v247, 7
      %v249 = vsub.s32 0, %v248
      %v250 = vrot.slane %v245, %v249
      %v252 = vadd.f32 %v213, %v250
      %v253 = vadd.f32 %v214, %v250
      %v254 = vadd.f32 %v215, %v250
      %v255 = vadd.f32 %v216, %v250
      %v256 = vadd.f32 %v217, %v250
      %v257 = vadd.f32 %v218, %v250
      %v258 = vadd.f32 %v219, %v250
      %v259 = vadd.f32 %v220, %v250
      %v260 = vadd.f32 %v221, %v250
      %v261 = vadd.f32 %v222, %v250
      %v262 = vadd.f32 %v223, %v250
      %v263 = vadd.f32 %v224, %v250
      %v264 = vadd.f32 %v225, %v250
      %v265 = vadd.f32 %v226, %v250
      %v266 = vadd.f32 %v227, %v250
      %v267 = vadd.f32 %v228, %v250
      %v268 = vadd.f32 %v229, %v250
      %v269 = vadd.f32 %v230, %v250
      %v270 = vadd.f32 %v231, %v250
      %v271 = vadd.f32 %v232, %v250
      %v272 = vadd.f32 %v233, %v250
      %v273 = vadd.f32 %v234, %v250
      %v274 = vadd.f32 %v235, %v250
      %v275 = vadd.f32 %v236, %v250
      %v276 = vadd.f32 %v237, %v250
      %v277 = vadd.f32 %v238, %v250
      %v278 = vadd.f32 %v239, %v250
      %v279 = vadd.f32 %v240, %v250
      %v280 = vadd.f32 %v241, %v250
      %v281 = vadd.f32 %v242, %v250
      %v282 = vadd.f32 %v243, %v250
      %v283 = vadd.f32 %v244, %v250
      %v284 = vmax.f32 %v252, 0.0
      %v285 = vmax.f32 %v253, 0.0
      %v286 = vmax.f32 %v254, 0.0
      %v287 = vmax.f32 %v255, 0.0
      %v288 = vmax.f32 %v256, 0.0
      %v289 = vmax.f32 %v257, 0.0
      %v290 = vmax.f32 %v258, 0.0
      %v291 = vmax.f32 %v259, 0.0
      %v292 = vmax.f32 %v260, 0.0
      %v293 = vmax.f32 %v261, 0.0
      %v294 = vmax.f32 %v262, 0.0
      %v295 = vmax.f32 %v263, 0.0
      %v296 = vmax.f32 %v264, 0.0
      %v297 = vmax.f32 %v265, 0.0
      %v298 = vmax.f32 %v266, 0.0
      %v299 = vmax.f32 %v267, 0.0
      %v300 = vmax.f32 %v268, 0.0
      %v301 = vmax.f32 %v269, 0.0
      %v302 = vmax.f32 %v270, 0.0
      %v303 = vmax.f32 %v271, 0.0
      %v304 = vmax.f32 %v272, 0.0
      %v305 = vmax.f32 %v273, 0.0
      %v306 = vmax.f32 %v274, 0.0
      %v307 = vmax.f32 %v275, 0.0
      %v308 = vmax.f32 %v276, 0.0
      %v309 = vmax.f32 %v277, 0.0
      %v310 = vmax.f32 %v278, 0.0
      %v311 = vmax.f32 %v279, 0.0
      %v312 = vmax.f32 %v280, 0.0
      %v313 = vmax.f32 %v281, 0.0
      %v314 = vmax.f32 %v282, 0.0
      %v315 = vmax.f32 %v283, 0.0
      %316 = vst [vmem:[%s172] sm:$0xff] %v284
      %317 = vst [vmem:[%s172 + $0x8] sm:$0xff] %v285
      %318 = vst [vmem:[%s172 + $0x10] sm:$0xff] %v286
      %319 = vst [vmem:[%s172 + $0x18] sm:$0xff] %v287
      %320 = vst [vmem:[%s172 + $0x20] sm:$0xff] %v288
      %321 = vst [vmem:[%s172 + $0x28] sm:$0xff] %v289
      %322 = vst [vmem:[%s172 + $0x30] sm:$0xff] %v290
      %323 = vst [vmem:[%s172 + $0x38] sm:$0xff] %v291
      %324 = vst [vmem:[%s172 + $0x40] sm:$0xff] %v292
      %325 = vst [vmem:[%s172 + $0x48] sm:$0xff] %v293
      %326 = vst [vmem:[%s172 + $0x50] sm:$0xff] %v294
      %327 = vst [vmem:[%s172 + $0x58] sm:$0xff] %v295
      %328 = vst [vmem:[%s172 + $0x60] sm:$0xff] %v296
      %329 = vst [vmem:[%s172 + $0x68] sm:$0xff] %v297
      %330 = vst [vmem:[%s172 + $0x70] sm:$0xff] %v298
      %331 = vst [vmem:[%s172 + $0x78] sm:$0xff] %v299
      %332 = vst [vmem:[%s172 + $0x80] sm:$0xff] %v300
      %333 = vst [vmem:[%s172 + $0x88] sm:$0xff] %v301
      %334 = vst [vmem:[%s172 + $0x90] sm:$0xff] %v302
      %335 = vst [vmem:[%s172 + $0x98] sm:$0xff] %v303
      %336 = vst [vmem:[%s172 + $0xa0] sm:$0xff] %v304
      %337 = vst [vmem:[%s172 + $0xa8] sm:$0xff] %v305
      %338 = vst [vmem:[%s172 + $0xb0] sm:$0xff] %v306
      %339 = vst [vmem:[%s172 + $0xb8] sm:$0xff] %v307
      %340 = vst [vmem:[%s172 + $0xc0] sm:$0xff] %v308
      %341 = vst [vmem:[%s172 + $0xc8] sm:$0xff] %v309
      %342 = vst [vmem:[%s172 + $0xd0] sm:$0xff] %v310
      %343 = vst [vmem:[%s172 + $0xd8] sm:$0xff] %v311
      %344 = vst [vmem:[%s172 + $0xe0] sm:$0xff] %v312
      %345 = vst [vmem:[%s172 + $0xe8] sm:$0xff] %v313
      %346 = vst [vmem:[%s172 + $0xf0] sm:$0xff] %v314
      %347 = vst [vmem:[%s172 + $0xf8] sm:$0xff] %v315
      %s348 = smul.u32 32, %s14
      %p349 = scmp.lt.s32.totalorder %s348, 63
      %s350 = scalar_select %p349, %s348, 63
      %s351 = smul.addr %s350, 8
      %s352 = scalar_lea.vmem %s3, %s351
      // Predicated region
      $region33: #{double_base_conv.5} parent=31 // pred_check
        %p353 = pneg %p100
      $region34: #{double_base_conv.5} parent=31 // pred_check_branch
        %355 = sbr.rel (%p353) target = $region36
      $region35: #{double_base_conv.5} parent=31 // pred_region
        %s356 = smul.u32 32, %s14
      $region36: #{double_base_conv.5} parent=31 // pred_fallthru
        _
    $region32: #{double_base_conv.5} parent=5 // pred_fallthru
      _
    %p357 = scmp.le.s32.totalorder 2, %s9
    // Predicated region
    $region37: #{double_base_conv.5} parent=5 // pred_check
      %p358 = pneg %p357
    $region38: #{double_base_conv.5} parent=5 // pred_check_branch
      %360 = sbr.rel (%p358) target = $region40
    $region39: #{double_base_conv.5} parent=5 // pred_region
      %s361 = ssub.s32 %s9, 2
      // Predicated region
      $region41: #{double_base_conv.5} parent=39 // pred_check
        %p362 = pneg %p106
      $region42: #{double_base_conv.5} parent=39 // pred_check_branch
        %364 = sbr.rel (%p362) target = $region44
      $region43: #{double_base_conv.5} parent=39 // pred_region
        %s365 = smul.u32 32, %s15
        %p366 = scmp.lt.s32.totalorder %s365, 63
        %s367 = scalar_select %p366, %s365, 63
        %s368 = smul.addr %s367, 8
        %s369 = scalar_lea.vmem %s3, %s368
      $region44: #{double_base_conv.5} parent=39 // pred_fallthru
        _
    $region40: #{double_base_conv.5} parent=5 // pred_fallthru
      _
  $region6: #{double_base_conv.5} parent=0 // loop_footer
    %s13 = sadd.s32 1, %s9
  $region7: #{double_base_conv.5} parent=0 // loop_footer_branch
    %8 = sbr.rel target = $region3
  $region8: #{double_base_conv.5} parent=0 // loop_exit
    _

// kernel: double_base_conv.4
$region0: #{double_base_conv.4}
  #allocation0 [shape = 'u32[]', space=smem, size = 0x4, offset = 0x4, fixed_abs, tag = 'smem constant byte address 0x4 - core index']
  #allocation1 [shape = 'u32[144,128]{1,0:T(1,128)}', space=vmem, size = 0x12000, scoped, tag = 'internal scratch']
  %s0 = inlined_call_operand.vmem [shape: bf16[512,128], index: 0, kind: input, shape index: {}]
  %s1 = inlined_call_operand.vmem [shape: bf16[128,128], index: 1, kind: input, shape index: {}]
  %s2 = inlined_call_operand.vmem [shape: f32[512,128], index: 2, kind: output, shape index: {0}]
  %s3 = inlined_call_operand.vmem [shape: f32[1,128], index: 3, kind: output, shape index: {1}]
  %s4 = inlined_call_operand.vmem [shape: f32[1,128], index: 4, kind: output, shape index: {2}]
  %5 = xla_tuple %s2, %s3, %s4
  %s6 = sld [smem:[#allocation0]]
  $region65: #{double_base_conv.4} parent=0
    _
  %s8 = ssub.s32 1, %s6
  %s9 = scalar_select 0, %s8, %s6
  loop: start=0, step=1, limit=4
  $region2: #{double_base_conv.4} parent=0 // loop_pre_header
    _
  $region3: #{double_base_conv.4} parent=0 // loop_header
    %s11 = sphi 0, %s15
    %p12 = scmp.ge.s32.totalorder %s11, 4
    %s21 = sphi 0, %s23
    %s24 = sphi 0, %s21
    %s25 = sphi 0, %s24
    %s41 = sphi 0, %s25
    %s45 = sphi 0, %s45
    %s47 = sphi 0, %s45
    %s48 = sphi 0, %s47
    %s62 = sphi 0, %s48
    %s68 = sphi 0, %s70
    %s71 = sphi 0, %s68
    %s72 = sphi 0, %s71
    %s88 = sphi 0, %s72
    %s92 = sphi 0, %s92
    %s94 = sphi 0, %s92
    %s95 = sphi 0, %s94
    %s109 = sphi 0, %s95
    %s113 = sphi 0, %s113
    %s115 = sphi 0, %s113
    %s116 = sphi 0, %s115
    %s130 = sphi 0, %s116
  $region4: #{double_base_conv.4} parent=0 // loop_header_branch
    %14 = sbr.rel (%p12) target = $region8
  $region5: #{double_base_conv.4} parent=0 // loop_body
    %s16 = ssub.s32 %s11, 1
    %s17 = ssub.s32 %s11, 2
    %s18 = sadd.s32 %s11, 1
    %s19 = ssub.s32 %s11, %s18
    %p20 = scmp.eq.s32.totalorder %s19, 0
    %s22 = sadd.s32 %s21, 1
    %s23 = scalar_select %p20, %s21, %s22
    %p26 = pneg %p20
    %p27 = scmp.eq.s32.totalorder %s11, 1
    %p28 = por %p26, %p27
    %p29 = scmp.ne.s32.totalorder %s21, %s24
    %p30 = scmp.eq.s32.totalorder %s11, 0
    %p31 = por %p29, %p30
    %p32 = scmp.ne.s32.totalorder %s21, %s24
    %p33 = scmp.eq.s32.totalorder %s16, 1
    %p34 = por %p32, %p33
    %p35 = scmp.ne.s32.totalorder %s24, %s25
    %p36 = scmp.eq.s32.totalorder %s16, 0
    %p37 = por %p35, %p36
    %p38 = scmp.ne.s32.totalorder %s24, %s25
    %p39 = scmp.eq.s32.totalorder %s17, 1
    %p40 = por %p38, %p39
    %p42 = scmp.ne.s32.totalorder %s25, %s41
    %p43 = scmp.eq.s32.totalorder %s17, 0
    %p44 = por %p42, %p43
    %s46 = sadd.s32 %s45, 1
    %p49 = scmp.eq.s32.totalorder %s11, 1
    %p50 = scmp.ne.s32.totalorder %s45, %s47
    %p51 = scmp.eq.s32.totalorder %s11, 0
    %p52 = por %p50, %p51
    %p53 = scmp.ne.s32.totalorder %s45, %s47
    %p54 = scmp.eq.s32.totalorder %s16, 1
    %p55 = por %p53, %p54
    %p56 = scmp.ne.s32.totalorder %s47, %s48
    %p57 = scmp.eq.s32.totalorder %s16, 0
    %p58 = por %p56, %p57
    %p59 = scmp.ne.s32.totalorder %s47, %s48
    %p60 = scmp.eq.s32.totalorder %s17, 1
    %p61 = por %p59, %p60
    %p63 = scmp.ne.s32.totalorder %s48, %s62
    %p64 = scmp.eq.s32.totalorder %s17, 0
    %p65 = por %p63, %p64
    %s66 = ssub.s32 %s11, %s18
    %p67 = scmp.eq.s32.totalorder %s66, 0
    %s69 = sadd.s32 %s68, 1
    %s70 = scalar_select %p67, %s68, %s69
    %p73 = pneg %p67
    %p74 = scmp.eq.s32.totalorder %s11, 1
    %p75 = por %p73, %p74
    %p76 = scmp.ne.s32.totalorder %s68, %s71
    %p77 = scmp.eq.s32.totalorder %s11, 0
    %p78 = por %p76, %p77
    %p79 = scmp.ne.s32.totalorder %s68, %s71
    %p80 = scmp.eq.s32.totalorder %s16, 1
    %p81 = por %p79, %p80
    %p82 = scmp.ne.s32.totalorder %s71, %s72
    %p83 = scmp.eq.s32.totalorder %s16, 0
    %p84 = por %p82, %p83
    %p85 = scmp.ne.s32.totalorder %s71, %s72
    %p86 = scmp.eq.s32.totalorder %s17, 1
    %p87 = por %p85, %p86
    %p89 = scmp.ne.s32.totalorder %s72, %s88
    %p90 = scmp.eq.s32.totalorder %s17, 0
    %p91 = por %p89, %p90
    %s93 = sadd.s32 %s92, 1
    %p96 = scmp.eq.s32.totalorder %s11, 1
    %p97 = scmp.ne.s32.totalorder %s92, %s94
    %p98 = scmp.eq.s32.totalorder %s11, 0
    %p99 = por %p97, %p98
    %p100 = scmp.ne.s32.totalorder %s92, %s94
    %p101 = scmp.eq.s32.totalorder %s16, 1
    %p102 = por %p100, %p101
    %p103 = scmp.ne.s32.totalorder %s94, %s95
    %p104 = scmp.eq.s32.totalorder %s16, 0
    %p105 = por %p103, %p104
    %p106 = scmp.ne.s32.totalorder %s94, %s95
    %p107 = scmp.eq.s32.totalorder %s17, 1
    %p108 = por %p106, %p107
    %p110 = scmp.ne.s32.totalorder %s95, %s109
    %p111 = scmp.eq.s32.totalorder %s17, 0
    %p112 = por %p110, %p111
    %s114 = sadd.s32 %s113, 1
    %p117 = scmp.eq.s32.totalorder %s11, 1
    %p118 = scmp.ne.s32.totalorder %s113, %s115
    %p119 = scmp.eq.s32.totalorder %s11, 0
    %p120 = por %p118, %p119
    %p121 = scmp.ne.s32.totalorder %s113, %s115
    %p122 = scmp.eq.s32.totalorder %s16, 1
    %p123 = por %p121, %p122
    %p124 = scmp.ne.s32.totalorder %s115, %s116
    %p125 = scmp.eq.s32.totalorder %s16, 0
    %p126 = por %p124, %p125
    %p127 = scmp.ne.s32.totalorder %s115, %s116
    %p128 = scmp.eq.s32.totalorder %s17, 1
    %p129 = por %p127, %p128
    %p131 = scmp.ne.s32.totalorder %s116, %s130
    %p132 = scmp.eq.s32.totalorder %s17, 0
    %p133 = por %p131, %p132
    %p134 = scmp.le.s32.totalorder 1, %s11
    %p135 = scmp.lt.s32.totalorder %s11, 3
    %p136 = pnand %p134, %p135
    %p137 = pneg %p136
    // Predicated region
    $region9: #{double_base_conv.4} parent=5 // pred_check
      _
    $region10: #{double_base_conv.4} parent=5 // pred_check_branch
      %139 = sbr.rel (%p136) target = $region12
    $region11: #{double_base_conv.4} parent=5 // pred_region
      %s140 = ssub.s32 %s11, 1
      // Predicated region
      $region13: #{double_base_conv.4} parent=11 // pred_check
        %p141 = pneg %p58
      $region14: #{double_base_conv.4} parent=11 // pred_check_branch
        %143 = sbr.rel (%p141) target = $region16
      $region15: #{double_base_conv.4} parent=11 // pred_region
        _
      $region16: #{double_base_conv.4} parent=11 // pred_fallthru
        _
    $region12: #{double_base_conv.4} parent=5 // pred_fallthru
      _
    %p144 = scmp.lt.s32.totalorder %s11, 2
    // Predicated region
    $region17: #{double_base_conv.4} parent=5 // pred_check
      %p145 = pneg %p144
    $region18: #{double_base_conv.4} parent=5 // pred_check_branch
      %147 = sbr.rel (%p145) target = $region20
    $region19: #{double_base_conv.4} parent=5 // pred_region
      // Predicated region
      $region21: #{double_base_conv.4} parent=19 // pred_check
        %p148 = pneg %p31
      $region22: #{double_base_conv.4} parent=19 // pred_check_branch
        %150 = sbr.rel (%p148) target = $region24
      $region23: #{double_base_conv.4} parent=19 // pred_region
        %s151 = smul.u32 32, %s11
        %p152 = scmp.lt.s32.totalorder %s151, 63
        %s153 = scalar_select %p152, %s151, 63
        %s154 = smul.addr %s153, 4
        %s155 = scalar_lea.vmem %s0, %s154
        %s156 = smul.u32 32, %s11
      $region24: #{double_base_conv.4} parent=19 // pred_fallthru
        _
    $region20: #{double_base_conv.4} parent=5 // pred_fallthru
      _
    %p157 = scmp.le.s32.totalorder 1, %s11
    %p158 = scmp.lt.s32.totalorder %s11, 3
    %p159 = pnand %p157, %p158
    %p160 = pneg %p159
    // Predicated region
    $region25: #{double_base_conv.4} parent=5 // pred_check
      _
    $region26: #{double_base_conv.4} parent=5 // pred_check_branch
      %162 = sbr.rel (%p159) target = $region28
    $region27: #{double_base_conv.4} parent=5 // pred_region
      %s163 = ssub.s32 %s11, 1
      %s164 = smul.u32 32, %s16
      %p165 = scmp.lt.s32.totalorder %s164, 63
      %s166 = scalar_select %p165, %s164, 63
      %s167 = smul.addr %s166, 4
      %s168 = scalar_lea.vmem %s0, %s167
      %p169 = pneg %p37
      %p170 = pneg %p34
      %p171 = pneg %p58
      %p172 = pneg %p55
      %p173 = pneg %p84
      %p174 = pneg %p81
      %s175 = smul.u32 32, %s16
      %p176 = scmp.lt.s32.totalorder %s175, 63
      %s177 = scalar_select %p176, %s175, 63
      %s178 = smul.addr %s177, 8
      %s179 = scalar_lea.vmem %s2, %s178
      %p180 = pneg %p105
      %p181 = pneg %p102
      %p182 = pneg %p126
      %p183 = pneg %p123
      %s184 = smul.u32 32, %s16
      %p185 = scmp.lt.s32.totalorder %s184, 63
      %s186 = scalar_select %p185, %s184, 63
      %s187 = smul.addr %s186, 4
      %s188 = scalar_lea.vmem %s0, %s187
      %s189 = smul.u32 32, %s16
      %s190 = smul.u32 32, %s16
      %p191 = scmp.lt.s32.totalorder %s190, 63
      %s192 = scalar_select %p191, %s190, 63
      %s193 = smul.addr %s192, 8
      %s194 = scalar_lea.vmem %s2, %s193
      %s195 = smul.u32 32, %s16
      %v197 = vld [vmem:[%s188] sm:$0xf]
      %v198 = vld [vmem:[%s188 + $0x4] sm:$0xf]
      %v199 = vld [vmem:[%s188 + $0x8] sm:$0xf]
      %v200 = vld [vmem:[%s188 + $0xc] sm:$0xf]
      %v201 = vld [vmem:[%s188 + $0x10] sm:$0xf]
      %v202 = vld [vmem:[%s188 + $0x14] sm:$0xf]
      %v203 = vld [vmem:[%s188 + $0x18] sm:$0xf]
      %v204 = vld [vmem:[%s188 + $0x1c] sm:$0xf]
      %v205 = vld [vmem:[%s188 + $0x20] sm:$0xf]
      %v206 = vld [vmem:[%s188 + $0x24] sm:$0xf]
      %v207 = vld [vmem:[%s188 + $0x28] sm:$0xf]
      %v208 = vld [vmem:[%s188 + $0x2c] sm:$0xf]
      %v209 = vld [vmem:[%s188 + $0x30] sm:$0xf]
      %v210 = vld [vmem:[%s188 + $0x34] sm:$0xf]
      %v211 = vld [vmem:[%s188 + $0x38] sm:$0xf]
      %v212 = vld [vmem:[%s188 + $0x3c] sm:$0xf]
      %v213 = vld [vmem:[%s188 + $0x40] sm:$0xf]
      %v214 = vld [vmem:[%s188 + $0x44] sm:$0xf]
      %v215 = vld [vmem:[%s188 + $0x48] sm:$0xf]
      %v216 = vld [vmem:[%s188 + $0x4c] sm:$0xf]
      %v217 = vld [vmem:[%s188 + $0x50] sm:$0xf]
      %v218 = vld [vmem:[%s188 + $0x54] sm:$0xf]
      %v219 = vld [vmem:[%s188 + $0x58] sm:$0xf]
      %v220 = vld [vmem:[%s188 + $0x5c] sm:$0xf]
      %v221 = vld [vmem:[%s188 + $0x60] sm:$0xf]
      %v222 = vld [vmem:[%s188 + $0x64] sm:$0xf]
      %v223 = vld [vmem:[%s188 + $0x68] sm:$0xf]
      %v224 = vld [vmem:[%s188 + $0x6c] sm:$0xf]
      %v225 = vld [vmem:[%s188 + $0x70] sm:$0xf]
      %v226 = vld [vmem:[%s188 + $0x74] sm:$0xf]
      %v227 = vld [vmem:[%s188 + $0x78] sm:$0xf]
      %v228 = vld [vmem:[%s188 + $0x7c] sm:$0xf]
      %v229 = vld [vmem:[%s1] sm:$0xf]
      %v230 = vld [vmem:[%s1 + $0x4] sm:$0xf]
      %v231 = vld [vmem:[%s1 + $0x8] sm:$0xf]
      %v232 = vld [vmem:[%s1 + $0xc] sm:$0xf]
      %v233 = vld [vmem:[%s1 + $0x10] sm:$0xf]
      %v234 = vld [vmem:[%s1 + $0x14] sm:$0xf]
      %v235 = vld [vmem:[%s1 + $0x18] sm:$0xf]
      %v236 = vld [vmem:[%s1 + $0x1c] sm:$0xf]
      %v237 = vld [vmem:[%s1 + $0x20] sm:$0xf]
      %v238 = vld [vmem:[%s1 + $0x24] sm:$0xf]
      %v239 = vld [vmem:[%s1 + $0x28] sm:$0xf]
      %v240 = vld [vmem:[%s1 + $0x2c] sm:$0xf]
      %v241 = vld [vmem:[%s1 + $0x30] sm:$0xf]
      %v242 = vld [vmem:[%s1 + $0x34] sm:$0xf]
      %v243 = vld [vmem:[%s1 + $0x38] sm:$0xf]
      %v244 = vld [vmem:[%s1 + $0x3c] sm:$0xf]
      %v277 = vunpack.c.l.b16 %v197
      %v278 = vunpack.c.l.b16 %v198
      %v279 = vunpack.c.l.b16 %v199
      %v280 = vunpack.c.l.b16 %v200
      %v281 = vunpack.c.l.b16 %v201
      %v282 = vunpack.c.l.b16 %v202
      %v283 = vunpack.c.l.b16 %v203
      %v284 = vunpack.c.l.b16 %v204
      %v285 = vunpack.c.l.b16 %v205
      %v286 = vunpack.c.l.b16 %v206
      %v287 = vunpack.c.l.b16 %v207
      %v288 = vunpack.c.l.b16 %v208
      %v289 = vunpack.c.l.b16 %v209
      %v290 = vunpack.c.l.b16 %v210
      %v291 = vunpack.c.l.b16 %v211
      %v292 = vunpack.c.l.b16 %v212
      %v293 = vunpack.c.l.b16 %v213
      %v294 = vunpack.c.l.b16 %v214
      %v295 = vunpack.c.l.b16 %v215
      %v296 = vunpack.c.l.b16 %v216
      %v297 = vunpack.c.l.b16 %v217
      %v298 = vunpack.c.l.b16 %v218
      %v299 = vunpack.c.l.b16 %v219
      %v300 = vunpack.c.l.b16 %v220
      %v301 = vunpack.c.l.b16 %v221
      %v302 = vunpack.c.l.b16 %v222
      %v303 = vunpack.c.l.b16 %v223
      %v304 = vunpack.c.l.b16 %v224
      %v305 = vunpack.c.l.b16 %v225
      %v306 = vunpack.c.l.b16 %v226
      %v307 = vunpack.c.l.b16 %v227
      %v308 = vunpack.c.l.b16 %v228
      %v309 = vpack.c.b16 %v278, %v277
      %v310 = vpack.c.b16 %v280, %v279
      %v311 = vpack.c.b16 %v282, %v281
      %v312 = vpack.c.b16 %v284, %v283
      %v313 = vpack.c.b16 %v286, %v285
      %v314 = vpack.c.b16 %v288, %v287
      %v315 = vpack.c.b16 %v290, %v289
      %v316 = vpack.c.b16 %v292, %v291
      %v317 = vpack.c.b16 %v294, %v293
      %v318 = vpack.c.b16 %v296, %v295
      %v319 = vpack.c.b16 %v298, %v297
      %v320 = vpack.c.b16 %v300, %v299
      %v321 = vpack.c.b16 %v302, %v301
      %v322 = vpack.c.b16 %v304, %v303
      %v323 = vpack.c.b16 %v306, %v305
      %v324 = vpack.c.b16 %v308, %v307
      %v357 = vunpack.c.l.b16 %v229
      %v358 = vunpack.c.l.b16 %v230
      %v359 = vunpack.c.l.b16 %v231
      %v360 = vunpack.c.l.b16 %v232
      %v361 = vunpack.c.l.b16 %v233
      %v362 = vunpack.c.l.b16 %v234
      %v363 = vunpack.c.l.b16 %v235
      %v364 = vunpack.c.l.b16 %v236
      %v365 = vunpack.c.l.b16 %v237
      %v366 = vunpack.c.l.b16 %v238
      %v367 = vunpack.c.l.b16 %v239
      %v368 = vunpack.c.l.b16 %v240
      %v369 = vunpack.c.l.b16 %v241
      %v370 = vunpack.c.l.b16 %v242
      %v371 = vunpack.c.l.b16 %v243
      %v372 = vunpack.c.l.b16 %v244
      %v373 = vpack.c.b16 %v358, %v357
      %v374 = vpack.c.b16 %v360, %v359
      %v375 = vpack.c.b16 %v362, %v361
      %v376 = vpack.c.b16 %v364, %v363
      %v377 = vpack.c.b16 %v366, %v365
      %v378 = vpack.c.b16 %v368, %v367
      %v379 = vpack.c.b16 %v370, %v369
      %v380 = vpack.c.b16 %v372, %v371
      %389 = vmatprep.subr.bf16.mxu0 0
      %390 = vmatpush1.bf16.msra.mxu0 %v373
      %391 = vmatprep.subr.bf16.mxu0 0
      %392 = vmatpush1.bf16.msra.mxu0 %v374
      %393 = vmatprep.subr.bf16.mxu0 0
      %394 = vmatpush1.bf16.msra.mxu0 %v375
      %395 = vmatprep.subr.bf16.mxu0 0
      %396 = vmatpush1.bf16.msra.mxu0 %v376
      %397 = vmatprep.subr.bf16.mxu0 0
      %398 = vmatpush1.bf16.msra.mxu0 %v377
      %399 = vmatprep.subr.bf16.mxu0 0
      %400 = vmatpush1.bf16.msra.mxu0 %v378
      %401 = vmatprep.subr.bf16.mxu0 0
      %402 = vmatpush1.bf16.msra.mxu0 %v379
      %403 = vmatprep.subr.bf16.mxu0 0
      %404 = vmatpush1.bf16.msra.mxu0 %v380
      %405 = vmatprep.subr.bf16.mxu0 0
      %406 = vmatpush1.bf16.msra.mxu0 0
      %407 = vmatprep.subr.bf16.mxu0 0
      %408 = vmatpush1.bf16.msra.mxu0 0
      %409 = vmatprep.subr.bf16.mxu0 0
      %410 = vmatpush1.bf16.msra.mxu0 0
      %411 = vmatprep.subr.bf16.mxu0 0
      %412 = vmatpush1.bf16.msra.mxu0 0
      %413 = vmatprep.subr.bf16.mxu0 0
      %414 = vmatpush1.bf16.msra.mxu0 0
      %415 = vmatprep.subr.bf16.mxu0 0
      %416 = vmatpush1.bf16.msra.mxu0 0
      %417 = vmatprep.subr.bf16.mxu0 0
      %418 = vmatpush1.bf16.msra.mxu0 0
      %419 = vmatprep.subr.bf16.mxu0 0
      %420 = vmatpush1.bf16.msra.mxu0 0
      %421 = vmatprep.mubr.bf16.mxu0 0
      %422 = vmatmul.mubr.bf16.gmra.mrb[0].mxu0 %v309
      %v423 = vpop.f32.mrb[0].mxu0
      %v424 = vadd.f32 0.0, %v423
      %v425 = vpop.f32.mrb[0].mxu0
      %v426 = vpop.f32.mrb[0].mxu0
      %v427 = vadd.f32 0.0, %v426
      %v428 = vpop.f32.mrb[0].mxu0
      %429 = vmatprep.mubr.bf16.mxu0 0
      %430 = vmatmul.mubr.bf16.gmra.mrb[0].mxu0 %v310
      %v431 = vpop.f32.mrb[0].mxu0
      %v432 = vadd.f32 0.0, %v431
      %v433 = vpop.f32.mrb[0].mxu0
      %v434 = vpop.f32.mrb[0].mxu0
      %v435 = vadd.f32 0.0, %v434
      %v436 = vpop.f32.mrb[0].mxu0
      %437 = vmatprep.mubr.bf16.mxu0 0
      %438 = vmatmul.mubr.bf16.gmra.mrb[0].mxu0 %v311
      %v439 = vpop.f32.mrb[0].mxu0
      %v440 = vadd.f32 0.0, %v439
      %v441 = vpop.f32.mrb[0].mxu0
      %v442 = vpop.f32.mrb[0].mxu0
      %v443 = vadd.f32 0.0, %v442
      %v444 = vpop.f32.mrb[0].mxu0
      %445 = vmatprep.mubr.bf16.mxu0 0
      %446 = vmatmul.mubr.bf16.gmra.mrb[0].mxu0 %v312
      %v447 = vpop.f32.mrb[0].mxu0
      %v448 = vadd.f32 0.0, %v447
      %v449 = vpop.f32.mrb[0].mxu0
      %v450 = vpop.f32.mrb[0].mxu0
      %v451 = vadd.f32 0.0, %v450
      %v452 = vpop.f32.mrb[0].mxu0
      %453 = vmatprep.mubr.bf16.mxu0 0
      %454 = vmatmul.mubr.bf16.gmra.mrb[0].mxu0 %v313
      %v455 = vpop.f32.mrb[0].mxu0
      %v456 = vadd.f32 0.0, %v455
      %v457 = vpop.f32.mrb[0].mxu0
      %v458 = vpop.f32.mrb[0].mxu0
      %v459 = vadd.f32 0.0, %v458
      %v460 = vpop.f32.mrb[0].mxu0
      %461 = vmatprep.mubr.bf16.mxu0 0
      %462 = vmatmul.mubr.bf16.gmra.mrb[0].mxu0 %v314
      %v463 = vpop.f32.mrb[0].mxu0
      %v464 = vadd.f32 0.0, %v463
      %v465 = vpop.f32.mrb[0].mxu0
      %v466 = vpop.f32.mrb[0].mxu0
      %v467 = vadd.f32 0.0, %v466
      %v468 = vpop.f32.mrb[0].mxu0
      %469 = vmatprep.mubr.bf16.mxu0 0
      %470 = vmatmul.mubr.bf16.gmra.mrb[0].mxu0 %v315
      %v471 = vpop.f32.mrb[0].mxu0
      %v472 = vadd.f32 0.0, %v471
      %v473 = vpop.f32.mrb[0].mxu0
      %v474 = vpop.f32.mrb[0].mxu0
      %v475 = vadd.f32 0.0, %v474
      %v476 = vpop.f32.mrb[0].mxu0
      %477 = vmatprep.mubr.bf16.mxu0 0
      %478 = vmatmul.mubr.bf16.gmra.mrb[0].mxu0 %v316
      %v479 = vpop.f32.mrb[0].mxu0
      %v480 = vadd.f32 0.0, %v479
      %v481 = vpop.f32.mrb[0].mxu0
      %v482 = vpop.f32.mrb[0].mxu0
      %v483 = vadd.f32 0.0, %v482
      %v484 = vpop.f32.mrb[0].mxu0
      %485 = vmatprep.mubr.bf16.mxu0 0
      %486 = vmatmul.mubr.bf16.gmra.mrb[0].mxu0 %v317
      %v487 = vpop.f32.mrb[0].mxu0
      %v488 = vadd.f32 0.0, %v487
      %v489 = vpop.f32.mrb[0].mxu0
      %v490 = vpop.f32.mrb[0].mxu0
      %v491 = vadd.f32 0.0, %v490
      %v492 = vpop.f32.mrb[0].mxu0
      %493 = vmatprep.mubr.bf16.mxu0 0
      %494 = vmatmul.mubr.bf16.gmra.mrb[0].mxu0 %v318
      %v495 = vpop.f32.mrb[0].mxu0
      %v496 = vadd.f32 0.0, %v495
      %v497 = vpop.f32.mrb[0].mxu0
      %v498 = vpop.f32.mrb[0].mxu0
      %v499 = vadd.f32 0.0, %v498
      %v500 = vpop.f32.mrb[0].mxu0
      %501 = vmatprep.mubr.bf16.mxu0 0
      %502 = vmatmul.mubr.bf16.gmra.mrb[0].mxu0 %v319
      %v503 = vpop.f32.mrb[0].mxu0
      %v504 = vadd.f32 0.0, %v503
      %v505 = vpop.f32.mrb[0].mxu0
      %v506 = vpop.f32.mrb[0].mxu0
      %v507 = vadd.f32 0.0, %v506
      %v508 = vpop.f32.mrb[0].mxu0
      %509 = vmatprep.mubr.bf16.mxu0 0
      %510 = vmatmul.mubr.bf16.gmra.mrb[0].mxu0 %v320
      %v511 = vpop.f32.mrb[0].mxu0
      %v512 = vadd.f32 0.0, %v511
      %v513 = vpop.f32.mrb[0].mxu0
      %v514 = vpop.f32.mrb[0].mxu0
      %v515 = vadd.f32 0.0, %v514
      %v516 = vpop.f32.mrb[0].mxu0
      %517 = vmatprep.mubr.bf16.mxu0 0
      %518 = vmatmul.mubr.bf16.gmra.mrb[0].mxu0 %v321
      %v519 = vpop.f32.mrb[0].mxu0
      %v520 = vadd.f32 0.0, %v519
      %v521 = vpop.f32.mrb[0].mxu0
      %v522 = vpop.f32.mrb[0].mxu0
      %v523 = vadd.f32 0.0, %v522
      %v524 = vpop.f32.mrb[0].mxu0
      %525 = vmatprep.mubr.bf16.mxu0 0
      %526 = vmatmul.mubr.bf16.gmra.mrb[0].mxu0 %v322
      %v527 = vpop.f32.mrb[0].mxu0
      %v528 = vadd.f32 0.0, %v527
      %v529 = vpop.f32.mrb[0].mxu0
      %v530 = vpop.f32.mrb[0].mxu0
      %v531 = vadd.f32 0.0, %v530
      %v532 = vpop.f32.mrb[0].mxu0
      %533 = vmatprep.mubr.bf16.mxu0 0
      %534 = vmatmul.mubr.bf16.gmra.mrb[0].mxu0 %v323
      %v535 = vpop.f32.mrb[0].mxu0
      %v536 = vadd.f32 0.0, %v535
      %v537 = vpop.f32.mrb[0].mxu0
      %v538 = vpop.f32.mrb[0].mxu0
      %v539 = vadd.f32 0.0, %v538
      %v540 = vpop.f32.mrb[0].mxu0
      %541 = vmatprep.mubr.bf16.mxu0 0
      %542 = vmatmul.mubr.bf16.gmra.mrb[0].mxu0 %v324
      %v543 = vpop.f32.mrb[0].mxu0
      %v544 = vadd.f32 0.0, %v543
      %v545 = vpop.f32.mrb[0].mxu0
      %v546 = vpop.f32.mrb[0].mxu0
      %v547 = vadd.f32 0.0, %v546
      %v548 = vpop.f32.mrb[0].mxu0
      %549 = vdwg.mxu0
      %550 = vst [vmem:[%s194] sm:$0xff] %v424
      %551 = vst [vmem:[%s194 + $0x8] sm:$0xff] %v427
      %552 = vst [vmem:[%s194 + $0x10] sm:$0xff] %v432
      %553 = vst [vmem:[%s194 + $0x18] sm:$0xff] %v435
      %554 = vst [vmem:[%s194 + $0x20] sm:$0xff] %v440
      %555 = vst [vmem:[%s194 + $0x28] sm:$0xff] %v443
      %556 = vst [vmem:[%s194 + $0x30] sm:$0xff] %v448
      %557 = vst [vmem:[%s194 + $0x38] sm:$0xff] %v451
      %558 = vst [vmem:[%s194 + $0x40] sm:$0xff] %v456
      %559 = vst [vmem:[%s194 + $0x48] sm:$0xff] %v459
      %560 = vst [vmem:[%s194 + $0x50] sm:$0xff] %v464
      %561 = vst [vmem:[%s194 + $0x58] sm:$0xff] %v467
      %562 = vst [vmem:[%s194 + $0x60] sm:$0xff] %v472
      %563 = vst [vmem:[%s194 + $0x68] sm:$0xff] %v475
      %564 = vst [vmem:[%s194 + $0x70] sm:$0xff] %v480
      %565 = vst [vmem:[%s194 + $0x78] sm:$0xff] %v483
      %566 = vst [vmem:[%s194 + $0x80] sm:$0xff] %v488
      %567 = vst [vmem:[%s194 + $0x88] sm:$0xff] %v491
      %568 = vst [vmem:[%s194 + $0x90] sm:$0xff] %v496
      %569 = vst [vmem:[%s194 + $0x98] sm:$0xff] %v499
      %570 = vst [vmem:[%s194 + $0xa0] sm:$0xff] %v504
      %571 = vst [vmem:[%s194 + $0xa8] sm:$0xff] %v507
      %572 = vst [vmem:[%s194 + $0xb0] sm:$0xff] %v512
      %573 = vst [vmem:[%s194 + $0xb8] sm:$0xff] %v515
      %574 = vst [vmem:[%s194 + $0xc0] sm:$0xff] %v520
      %575 = vst [vmem:[%s194 + $0xc8] sm:$0xff] %v523
      %576 = vst [vmem:[%s194 + $0xd0] sm:$0xff] %v528
      %577 = vst [vmem:[%s194 + $0xd8] sm:$0xff] %v531
      %578 = vst [vmem:[%s194 + $0xe0] sm:$0xff] %v536
      %579 = vst [vmem:[%s194 + $0xe8] sm:$0xff] %v539
      %580 = vst [vmem:[%s194 + $0xf0] sm:$0xff] %v544
      %581 = vst [vmem:[%s194 + $0xf8] sm:$0xff] %v547
      %v582 = vadd.f32 %v424, %v427
      %v583 = vadd.f32 %v582, %v432
      %v584 = vadd.f32 %v583, %v435
      %v585 = vadd.f32 %v584, %v440
      %v586 = vadd.f32 %v585, %v443
      %v587 = vadd.f32 %v586, %v448
      %v588 = vadd.f32 %v587, %v451
      %v589 = vadd.f32 %v588, %v456
      %v590 = vadd.f32 %v589, %v459
      %v591 = vadd.f32 %v590, %v464
      %v592 = vadd.f32 %v591, %v467
      %v593 = vadd.f32 %v592, %v472
      %v594 = vadd.f32 %v593, %v475
      %v595 = vadd.f32 %v594, %v480
      %v596 = vadd.f32 %v595, %v483
      %v597 = vadd.f32 %v596, %v488
      %v598 = vadd.f32 %v597, %v491
      %v599 = vadd.f32 %v598, %v496
      %v600 = vadd.f32 %v599, %v499
      %v601 = vadd.f32 %v600, %v504
      %v602 = vadd.f32 %v601, %v507
      %v603 = vadd.f32 %v602, %v512
      %v604 = vadd.f32 %v603, %v515
      %v605 = vadd.f32 %v604, %v520
      %v606 = vadd.f32 %v605, %v523
      %v607 = vadd.f32 %v606, %v528
      %v608 = vadd.f32 %v607, %v531
      %v609 = vadd.f32 %v608, %v536
      %v610 = vadd.f32 %v609, %v539
      %v611 = vadd.f32 %v610, %v544
      %v612 = vadd.f32 %v611, %v547
      %v613 = vrot.slane %v612, 4
      %v614 = vadd.f32 %v612, %v613
      %v615 = vrot.slane %v614, 2
      %v616 = vadd.f32 %v614, %v615
      %v617 = vrot.slane %v616, 1
      %v618 = vadd.f32 %v616, %v617
      %v619 = vmul.f32 %v424, %v424
      %v620 = vmul.f32 %v427, %v427
      %v621 = vmul.f32 %v432, %v432
      %v622 = vmul.f32 %v435, %v435
      %v623 = vmul.f32 %v440, %v440
      %v624 = vmul.f32 %v443, %v443
      %v625 = vmul.f32 %v448, %v448
      %v626 = vmul.f32 %v451, %v451
      %v627 = vmul.f32 %v456, %v456
      %v628 = vmul.f32 %v459, %v459
      %v629 = vmul.f32 %v464, %v464
      %v630 = vmul.f32 %v467, %v467
      %v631 = vmul.f32 %v472, %v472
      %v632 = vmul.f32 %v475, %v475
      %v633 = vmul.f32 %v480, %v480
      %v634 = vmul.f32 %v483, %v483
      %v635 = vmul.f32 %v488, %v488
      %v636 = vmul.f32 %v491, %v491
      %v637 = vmul.f32 %v496, %v496
      %v638 = vmul.f32 %v499, %v499
      %v639 = vmul.f32 %v504, %v504
      %v640 = vmul.f32 %v507, %v507
      %v641 = vmul.f32 %v512, %v512
      %v642 = vmul.f32 %v515, %v515
      %v643 = vmul.f32 %v520, %v520
      %v644 = vmul.f32 %v523, %v523
      %v645 = vmul.f32 %v528, %v528
      %v646 = vmul.f32 %v531, %v531
      %v647 = vmul.f32 %v536, %v536
      %v648 = vmul.f32 %v539, %v539
      %v649 = vmul.f32 %v544, %v544
      %v650 = vmul.f32 %v547, %v547
      %v651 = vadd.f32 %v619, %v620
      %v652 = vadd.f32 %v651, %v621
      %v653 = vadd.f32 %v652, %v622
      %v654 = vadd.f32 %v653, %v623
      %v655 = vadd.f32 %v654, %v624
      %v656 = vadd.f32 %v655, %v625
      %v657 = vadd.f32 %v656, %v626
      %v658 = vadd.f32 %v657, %v627
      %v659 = vadd.f32 %v658, %v628
      %v660 = vadd.f32 %v659, %v629
      %v661 = vadd.f32 %v660, %v630
      %v662 = vadd.f32 %v661, %v631
      %v663 = vadd.f32 %v662, %v632
      %v664 = vadd.f32 %v663, %v633
      %v665 = vadd.f32 %v664, %v634
      %v666 = vadd.f32 %v665, %v635
      %v667 = vadd.f32 %v666, %v636
      %v668 = vadd.f32 %v667, %v637
      %v669 = vadd.f32 %v668, %v638
      %v670 = vadd.f32 %v669, %v639
      %v671 = vadd.f32 %v670, %v640
      %v672 = vadd.f32 %v671, %v641
      %v673 = vadd.f32 %v672, %v642
      %v674 = vadd.f32 %v673, %v643
      %v675 = vadd.f32 %v674, %v644
      %v676 = vadd.f32 %v675, %v645
      %v677 = vadd.f32 %v676, %v646
      %v678 = vadd.f32 %v677, %v647
      %v679 = vadd.f32 %v678, %v648
      %v680 = vadd.f32 %v679, %v649
      %v681 = vadd.f32 %v680, %v650
      %v682 = vrot.slane %v681, 4
      %v683 = vadd.f32 %v681, %v682
      %v684 = vrot.slane %v683, 2
      %v685 = vadd.f32 %v683, %v684
      %v686 = vrot.slane %v685, 1
      %v687 = vadd.f32 %v685, %v686
      %p688 = scmp.eq.s32.totalorder %s16, 0
      // Predicated region
      $region29: #{double_base_conv.4} parent=27 // pred_check
        %p689 = pneg %p688
      $region30: #{double_base_conv.4} parent=27 // pred_check_branch
        %691 = sbr.rel (%p689) target = $region32
      $region31: #{double_base_conv.4} parent=27 // pred_region
        %692 = vst [vmem:[%s3] sm:$0x1] %v618
        %693 = vst [vmem:[%s4] sm:$0x1] %v687
      $region32: #{double_base_conv.4} parent=27 // pred_fallthru
        _
      %p694 = scmp.gt.s32.totalorder %s16, 0
      // Predicated region
      $region33: #{double_base_conv.4} parent=27 // pred_check
        %p695 = pneg %p694
      $region34: #{double_base_conv.4} parent=27 // pred_check_branch
        %697 = sbr.rel (%p695) target = $region36
      $region35: #{double_base_conv.4} parent=27 // pred_region
        %v698 = vld [vmem:[%s3] sm:$0x1]
        %v699 = vadd.f32 %v698, %v618
        %700 = vst [vmem:[%s3] sm:$0x1] %v699
        %v701 = vld [vmem:[%s4] sm:$0x1]
        %v702 = vadd.f32 %v701, %v687
        %703 = vst [vmem:[%s4] sm:$0x1] %v702
      $region36: #{double_base_conv.4} parent=27 // pred_fallthru
        _
      %s704 = smul.u32 32, %s16
      %p705 = scmp.lt.s32.totalorder %s704, 63
      %s706 = scalar_select %p705, %s704, 63
      %s707 = smul.addr %s706, 8
      %s708 = scalar_lea.vmem %s2, %s707
      // Predicated region
      $region37: #{double_base_conv.4} parent=27 // pred_check
        %p709 = pneg %p81
      $region38: #{double_base_conv.4} parent=27 // pred_check_branch
        %711 = sbr.rel (%p709) target = $region40
      $region39: #{double_base_conv.4} parent=27 // pred_region
        %s712 = smul.u32 32, %s16
      $region40: #{double_base_conv.4} parent=27 // pred_fallthru
        _
      // Predicated region
      $region41: #{double_base_conv.4} parent=27 // pred_check
        %p713 = pneg %p102
      $region42: #{double_base_conv.4} parent=27 // pred_check_branch
        %715 = sbr.rel (%p713) target = $region44
      $region43: #{double_base_conv.4} parent=27 // pred_region
        _
      $region44: #{double_base_conv.4} parent=27 // pred_fallthru
        _
      // Predicated region
      $region45: #{double_base_conv.4} parent=27 // pred_check
        %p716 = pneg %p123
      $region46: #{double_base_conv.4} parent=27 // pred_check_branch
        %718 = sbr.rel (%p716) target = $region48
      $region47: #{double_base_conv.4} parent=27 // pred_region
        _
      $region48: #{double_base_conv.4} parent=27 // pred_fallthru
        _
      // Predicated region
      $region49: #{double_base_conv.4} parent=27 // pred_check
        %p719 = pneg %p102
      $region50: #{double_base_conv.4} parent=27 // pred_check_branch
        %721 = sbr.rel (%p719) target = $region52
      $region51: #{double_base_conv.4} parent=27 // pred_region
        _
      $region52: #{double_base_conv.4} parent=27 // pred_fallthru
        _
      // Predicated region
      $region53: #{double_base_conv.4} parent=27 // pred_check
        %p722 = pneg %p123
      $region54: #{double_base_conv.4} parent=27 // pred_check_branch
        %724 = sbr.rel (%p722) target = $region56
      $region55: #{double_base_conv.4} parent=27 // pred_region
        _
      $region56: #{double_base_conv.4} parent=27 // pred_fallthru
        _
    $region28: #{double_base_conv.4} parent=5 // pred_fallthru
      _
    %p725 = scmp.le.s32.totalorder 2, %s11
    // Predicated region
    $region57: #{double_base_conv.4} parent=5 // pred_check
      %p726 = pneg %p725
    $region58: #{double_base_conv.4} parent=5 // pred_check_branch
      %728 = sbr.rel (%p726) target = $region60
    $region59: #{double_base_conv.4} parent=5 // pred_region
      %s729 = ssub.s32 %s11, 2
      // Predicated region
      $region61: #{double_base_conv.4} parent=59 // pred_check
        %p730 = pneg %p87
      $region62: #{double_base_conv.4} parent=59 // pred_check_branch
        %732 = sbr.rel (%p730) target = $region64
      $region63: #{double_base_conv.4} parent=59 // pred_region
        %s733 = smul.u32 32, %s17
        %p734 = scmp.lt.s32.totalorder %s733, 63
        %s735 = scalar_select %p734, %s733, 63
        %s736 = smul.addr %s735, 8
        %s737 = scalar_lea.vmem %s2, %s736
      $region64: #{double_base_conv.4} parent=59 // pred_fallthru
        _
    $region60: #{double_base_conv.4} parent=5 // pred_fallthru
      _
  $region6: #{double_base_conv.4} parent=0 // loop_footer
    %s15 = sadd.s32 1, %s11
  $region7: #{double_base_conv.4} parent=0 // loop_footer_branch
    %10 = sbr.rel target = $region3
  $region8: #{double_base_conv.4} parent=0 // loop_exit
    _

</llo_original>
